<compile_context>
chip_gen: v5e
topology: v5e:2x2
jax: 0.10.0
libtpu: 0.0.40
codegen_flags: <defaults>
</compile_context>

<pallas_src>
import jax
import jax.numpy as jnp
from jax.experimental import pallas as pl
from jax.experimental.pallas import tpu as pltpu

# ----------------------------- configuration --------------------------------
BATCH = 2
IMG_C, IMG_H, IMG_W = 3, 16, 16
CONV_OUT = 64                 # backbone feature dim (visual_feature_dim)
CAM_HEAD_DIM = 32
NUM_OBJECTS = 10
OBJ_EMB_DIM = 16
THETA_DIM = 22 * 6            # SMPL pose in 6D repr (global orient + 21 joints)
GAMMA_DIM = 32                # HO-offset latent dim
FLOW_HIDDEN = 64
INIT_CAM = (0.9, 0.0, 0.0)

PAD_B = 8                     # batch rows padded to a full sublane tile

# output-slab column layout (lane-dense, width padded to a multiple of 128)
COL_CAM = 0
COL_BETAS = 3
COL_THETA = 13
COL_GAMMA = COL_THETA + THETA_DIM          # 145
COL_THETA_LP = COL_GAMMA + GAMMA_DIM       # 177
COL_GAMMA_LP = COL_THETA_LP + 1            # 178
COL_VF = COL_GAMMA_LP + 1                  # 179
OUT_W = 256                                # 179 + 64 = 243 used, pad to 256


# ----------------------------- fused Pallas kernel ---------------------------
def _fused_forward_kernel(
        patches_ref, pool_ref, emb_ref,
        conv_w_ref, conv_b_ref,
        fc1_w_ref, fc1_b_ref,
        t1h_ref, t1e_ref, t1b_ref,
        g1h_ref, g1e_ref, g1b_ref, t2g_ref,
        fc2_wide_ref, th_wide_ref, gh_wide_ref, vf_sel_ref, slab_b_ref,
        out_ref):
    f32 = jnp.float32

    def mm(a, b):
        return jnp.dot(a, b, preferred_element_type=f32)

    # ---- backbone: im2col conv + ReLU, then fused global avg pool ----
    conv = jnp.maximum(mm(patches_ref[...], conv_w_ref[...]) + conv_b_ref[...], 0.0)
    vf = mm(pool_ref[...], conv)                                   # (PAD_B, 64)

    # ---- FCHeader trunk (cam/betas come out of the wide slab matmul) ----
    h = jnp.maximum(mm(vf, fc1_w_ref[...]) + fc1_b_ref[...], 0.0)  # (PAD_B, 32)

    # ---- StackFlow-style conditional heads (mode z = 0) ----
    emb = emb_ref[...]                                             # (PAD_B, 16)
    th = jnp.maximum(mm(vf, t1h_ref[...]) + mm(emb, t1e_ref[...])
                     + t1b_ref[...], 0.0)                          # (PAD_B, 64)
    # gamma hidden: theta-mean conditioning pre-folded into t2g_ref / g1b_ref
    gh = jnp.maximum(mm(vf, g1h_ref[...]) + mm(emb, g1e_ref[...])
                     + mm(th, t2g_ref[...]) + g1b_ref[...], 0.0)   # (PAD_B, 64)

    # ---- lane-dense output slab ----
    # Each piece (cam|betas, pred_theta, pred_gamma, theta/gamma log-prob,
    # visual features) is placed at its column range by zero-embedded wide
    # weight / selector matrices built at init, so the only store is one
    # unmasked full-width (PAD_B, OUT_W) vst and no cross-lane ops are needed.
    slab = (mm(h, fc2_wide_ref[...])        # cam (+INIT_CAM in bias) | betas
            + mm(th, th_wide_ref[...])      # pred_theta | theta_log_prob
            + mm(gh, gh_wide_ref[...])      # pred_gamma | gamma_log_prob
            + mm(vf, vf_sel_ref[...])       # visual features
            + slab_b_ref[...])
    out_ref[...] = slab.astype(out_ref.dtype)


def _fused_call(patches, pool, obj_emb, p):
    vmem = pl.BlockSpec(memory_space=pltpu.MemorySpace.VMEM)
    args = (patches, pool, obj_emb,
            p["conv_w"], p["conv_b"],
            p["fc1_w"], p["fc1_b"],
            p["t1h_w"], p["t1e_w"], p["t1_b"],
            p["g1h_w"], p["g1e_w"], p["g1_b"], p["t2g_w"],
            p["fc2_wide"], p["th_wide"], p["gh_wide"], p["vf_sel"],
            p["slab_bias"])
    return pl.pallas_call(
        _fused_forward_kernel,
        out_shape=jax.ShapeDtypeStruct((PAD_B, OUT_W), jnp.float32),
        in_specs=[vmem] * len(args),
        out_specs=vmem,
    )(*args)


# ----------------------------- JAX glue --------------------------------------
def im2col(x_nhwc, kh, kw, stride, pad):
    x = jnp.pad(x_nhwc, ((0, 0), (pad, pad), (pad, pad), (0, 0)))
    B, H, W, C = x.shape
    oh = (H - kh) // stride + 1
    ow = (W - kw) // stride + 1
    cols = []
    for i in range(kh):
        for j in range(kw):
            cols.append(x[:, i:i + stride * oh:stride, j:j + stride * ow:stride, :])
    patches = jnp.concatenate(cols, axis=-1)          # (B, oh, ow, kh*kw*C)
    return patches.reshape(B * oh * ow, kh * kw * C), oh, ow


def init_params(key):
    def dense(k, fan_in, fan_out, scale=None):
        if scale is None:
            scale = 1.0 / jnp.sqrt(fan_in)
        w = jax.random.normal(k, (fan_in, fan_out), jnp.float32) * scale
        b = jnp.zeros((fan_out,), jnp.float32)
        return w, b

    ks = jax.random.split(key, 8)
    conv_w, conv_b = dense(ks[0], 3 * 3 * IMG_C, CONV_OUT)
    fc1_w, fc1_b = dense(ks[1], CONV_OUT, CAM_HEAD_DIM)
    fc2_w, fc2_b = dense(ks[2], CAM_HEAD_DIM, 13, scale=0.02)
    emb_w, emb_b = dense(ks[3], NUM_OBJECTS, OBJ_EMB_DIM)
    t1_w, t1_b = dense(ks[4], CONV_OUT + OBJ_EMB_DIM, FLOW_HIDDEN)
    t2_w, t2_b = dense(ks[5], FLOW_HIDDEN, 2 * THETA_DIM)
    g1_w, g1_b = dense(ks[6], CONV_OUT + OBJ_EMB_DIM + THETA_DIM, FLOW_HIDDEN)
    g2_w, g2_b = dense(ks[7], FLOW_HIDDEN, 2 * GAMMA_DIM)

    # split conditioning weights so the kernel never concatenates inputs
    t1h_w, t1e_w = t1_w[:CONV_OUT], t1_w[CONV_OUT:]
    g1h_w = g1_w[:CONV_OUT]
    g1e_w = g1_w[CONV_OUT:CONV_OUT + OBJ_EMB_DIM]
    g1t_w = g1_w[CONV_OUT + OBJ_EMB_DIM:]
    # mean / log-scale split of the affine-head output layers
    t2mu_w, t2ls_w = t2_w[:, :THETA_DIM], t2_w[:, THETA_DIM:]
    t2mu_b, t2ls_b = t2_b[:THETA_DIM], t2_b[THETA_DIM:]
    g2mu_w, g2ls_w = g2_w[:, :GAMMA_DIM], g2_w[:, GAMMA_DIM:]
    g2mu_b, g2ls_b = g2_b[:GAMMA_DIM], g2_b[GAMMA_DIM:]

    # fold the theta conditioning of the gamma head through the theta mean
    # layer (exact):  pred_theta @ g1t == th @ (t2mu_w @ g1t) + t2mu_b @ g1t
    t2g_w = t2mu_w @ g1t_w                        # (64, 64)
    g1_b_fused = g1_b + t2mu_b @ g1t_w            # (64,)

    nhl2pi = -0.5 * jnp.log(2.0 * jnp.pi)

    # zero-embedded wide placement matrices for the lane-dense output slab
    def place(w, col):
        wide = jnp.zeros((w.shape[0], OUT_W), jnp.float32)
        return wide.at[:, col:col + w.shape[1]].set(w)

    fc2_wide = place(fc2_w, COL_CAM)                       # cam | betas
    # theta mean at COL_THETA; log-prob-at-mode contribution (linear in th)
    # at COL_THETA_LP:  sum(nhl2pi - logs) == th @ (-rowsum(t2ls_w)) + const
    th_wide = place(t2mu_w, COL_THETA)
    th_wide = th_wide.at[:, COL_THETA_LP].set(-jnp.sum(t2ls_w, axis=1))
    gh_wide = place(g2mu_w, COL_GAMMA)
    gh_wide = gh_wide.at[:, COL_GAMMA_LP].set(-jnp.sum(g2ls_w, axis=1))
    vf_sel = place(jnp.eye(CONV_OUT, dtype=jnp.float32), COL_VF)

    init_cam = jnp.asarray(INIT_CAM, jnp.float32)
    slab_bias = jnp.zeros((OUT_W,), jnp.float32)
    # INIT_CAM folded into the header bias so pred_cam comes out of the matmul
    slab_bias = slab_bias.at[COL_CAM:COL_CAM + 13].set(
        fc2_b + jnp.concatenate([init_cam, jnp.zeros((10,), jnp.float32)]))
    slab_bias = slab_bias.at[COL_THETA:COL_THETA + THETA_DIM].set(t2mu_b)
    slab_bias = slab_bias.at[COL_GAMMA:COL_GAMMA + GAMMA_DIM].set(g2mu_b)
    slab_bias = slab_bias.at[COL_THETA_LP].set(THETA_DIM * nhl2pi - jnp.sum(t2ls_b))
    slab_bias = slab_bias.at[COL_GAMMA_LP].set(GAMMA_DIM * nhl2pi - jnp.sum(g2ls_b))

    return dict(
        conv_w=conv_w, conv_b=conv_b.reshape(1, -1),
        fc1_w=fc1_w, fc1_b=fc1_b.reshape(1, -1),
        emb_w=emb_w, emb_b=emb_b,
        t1h_w=t1h_w, t1e_w=t1e_w, t1_b=t1_b.reshape(1, -1),
        g1h_w=g1h_w, g1e_w=g1e_w, g1_b=g1_b_fused.reshape(1, -1),
        t2g_w=t2g_w,
        fc2_wide=fc2_wide, th_wide=th_wide, gh_wide=gh_wide,
        vf_sel=vf_sel, slab_bias=slab_bias.reshape(1, -1),
    )


@jax.jit
def model_forward(params, image_nchw, object_labels):
    B = image_nchw.shape[0]
    assert B <= PAD_B

    # ---------------- backbone input prep ('resnet' path) ----------------
    x_nhwc = jnp.transpose(image_nchw, (0, 2, 3, 1)).astype(jnp.float32)
    patches, oh, ow = im2col(x_nhwc, 3, 3, stride=2, pad=1)   # (B*oh*ow, 27)
    spatial = oh * ow
    rows = patches.shape[0]

    # pooling matrix (constant-folded): row b averages image b's spatial rows;
    # rows >= B are all zero, so padded batch rows produce zero features.
    row_id = jnp.arange(PAD_B, dtype=jnp.int32)[:, None]
    col_id = jnp.arange(rows, dtype=jnp.int32)[None, :]
    pool = jnp.where((col_id // spatial) == row_id,
                     jnp.float32(1.0 / spatial), jnp.float32(0.0))

    # object-label embedding: row gather (no one-hot matmul kernel)
    obj_emb = params["emb_w"][object_labels] + params["emb_b"][None, :]
    obj_emb = jnp.zeros((PAD_B, OBJ_EMB_DIM), jnp.float32).at[:B].set(obj_emb)

    # ---------------- single fused Pallas kernel ----------------
    slab = _fused_call(patches, pool, obj_emb, params)[:B]     # (B, OUT_W)

    visual_features = slab[:, COL_VF:COL_VF + CONV_OUT]
    human_features = hoi_features = visual_features
    pred_cam = slab[:, COL_CAM:COL_CAM + 3]
    pred_betas = slab[:, COL_BETAS:COL_BETAS + 10]
    pred_theta = slab[:, COL_THETA:COL_THETA + THETA_DIM]
    pred_gamma = slab[:, COL_GAMMA:COL_GAMMA + GAMMA_DIM]
    theta_log_prob = slab[:, COL_THETA_LP]
    gamma_log_prob = slab[:, COL_GAMMA_LP]
    theta_z = jnp.zeros((B, THETA_DIM), jnp.float32)
    gamma_z = jnp.zeros((B, GAMMA_DIM), jnp.float32)

    return {
        "human_features": human_features,
        "hoi_features": hoi_features,
        "pred_betas": pred_betas,
        "pred_cam": pred_cam,
        "pred_theta": pred_theta,
        "theta_log_prob": theta_log_prob,
        "theta_z": theta_z,
        "pred_gamma": pred_gamma,
        "gamma_log_prob": gamma_log_prob,
        "gamma_z": gamma_z,
    }


if __name__ == "__main__":
    key = jax.random.PRNGKey(0)
    k_param, k_img, k_lab = jax.random.split(key, 3)

    params = init_params(k_param)
    image = jax.random.normal(k_img, (BATCH, IMG_C, IMG_H, IMG_W), jnp.float32)
    object_labels = jax.random.randint(k_lab, (BATCH,), 0, NUM_OBJECTS)

    out = model_forward(params, image, object_labels)
    out = jax.tree_util.tree_map(jax.block_until_ready, out)

    # basic shape sanity checks
    assert out["pred_betas"].shape == (BATCH, 10)
    assert out["pred_cam"].shape == (BATCH, 3)
    assert out["pred_theta"].shape == (BATCH, THETA_DIM)
    assert out["pred_gamma"].shape == (BATCH, GAMMA_DIM)
    assert out["theta_log_prob"].shape == (BATCH,)
    assert out["gamma_log_prob"].shape == (BATCH,)
    assert out["human_features"].shape == (BATCH, CONV_OUT)
    assert bool(jnp.all(jnp.isfinite(out["pred_theta"])))
    assert bool(jnp.all(jnp.isfinite(out["theta_log_prob"])))
    print("KERNEL_OK")
</pallas_src>

<mosaic_0001>
module attributes {stable_mosaic.version = 11 : i64} {
  func.func @_fused_forward_kernel(%arg0: memref<128x27xf32, #tpu.memory_space<vmem>>, %arg1: memref<8x128xf32, #tpu.memory_space<vmem>>, %arg2: memref<8x16xf32, #tpu.memory_space<vmem>>, %arg3: memref<27x64xf32, #tpu.memory_space<vmem>>, %arg4: memref<1x64xf32, #tpu.memory_space<vmem>>, %arg5: memref<64x32xf32, #tpu.memory_space<vmem>>, %arg6: memref<1x32xf32, #tpu.memory_space<vmem>>, %arg7: memref<64x64xf32, #tpu.memory_space<vmem>>, %arg8: memref<16x64xf32, #tpu.memory_space<vmem>>, %arg9: memref<1x64xf32, #tpu.memory_space<vmem>>, %arg10: memref<64x64xf32, #tpu.memory_space<vmem>>, %arg11: memref<16x64xf32, #tpu.memory_space<vmem>>, %arg12: memref<1x64xf32, #tpu.memory_space<vmem>>, %arg13: memref<64x64xf32, #tpu.memory_space<vmem>>, %arg14: memref<32x256xf32, #tpu.memory_space<vmem>>, %arg15: memref<64x256xf32, #tpu.memory_space<vmem>>, %arg16: memref<64x256xf32, #tpu.memory_space<vmem>>, %arg17: memref<64x256xf32, #tpu.memory_space<vmem>>, %arg18: memref<1x256xf32, #tpu.memory_space<vmem>>, %arg19: memref<8x256xf32, #tpu.memory_space<vmem>>) attributes {dimension_semantics = [], scalar_prefetch = 0 : i64, scratch_operands = 0 : i64, tpu.core_type = #tpu.core_type<tc>} {
    %c0 = arith.constant 0 : index
    %c0_0 = arith.constant 0 : index
    %0 = vector.load %arg0[%c0, %c0_0] : memref<128x27xf32, #tpu.memory_space<vmem>>, vector<128x27xf32>
    %c0_1 = arith.constant 0 : index
    %c0_2 = arith.constant 0 : index
    %1 = vector.load %arg3[%c0_1, %c0_2] : memref<27x64xf32, #tpu.memory_space<vmem>>, vector<27x64xf32>
    %cst = arith.constant dense<0.000000e+00> : vector<128x64xf32>
    %2 = tpu.matmul %0, %1, %cst {dimension_numbers = #tpu.dot_dimension_numbers<[1], [0], [0], [1], [0, 0, 1, 1], [], []>} : vector<128x27xf32>, vector<27x64xf32>, vector<128x64xf32> -> vector<128x64xf32>
    %c0_3 = arith.constant 0 : index
    %c0_4 = arith.constant 0 : index
    %3 = vector.load %arg4[%c0_3, %c0_4] : memref<1x64xf32, #tpu.memory_space<vmem>>, vector<1x64xf32>
    %4 = vector.broadcast %3 : vector<1x64xf32> to vector<128x64xf32>
    %5 = arith.addf %2, %4 : vector<128x64xf32>
    %cst_5 = arith.constant 0.000000e+00 : f32
    %6 = vector.broadcast %cst_5 : f32 to vector<128x64xf32>
    %7 = arith.maximumf %5, %6 : vector<128x64xf32>
    %c0_6 = arith.constant 0 : index
    %c0_7 = arith.constant 0 : index
    %8 = vector.load %arg1[%c0_6, %c0_7] : memref<8x128xf32, #tpu.memory_space<vmem>>, vector<8x128xf32>
    %cst_8 = arith.constant dense<0.000000e+00> : vector<8x64xf32>
    %9 = tpu.matmul %8, %7, %cst_8 {dimension_numbers = #tpu.dot_dimension_numbers<[1], [0], [0], [1], [0, 0, 1, 1], [], []>} : vector<8x128xf32>, vector<128x64xf32>, vector<8x64xf32> -> vector<8x64xf32>
    %c0_9 = arith.constant 0 : index
    %c0_10 = arith.constant 0 : index
    %10 = vector.load %arg5[%c0_9, %c0_10] : memref<64x32xf32, #tpu.memory_space<vmem>>, vector<64x32xf32>
    %cst_11 = arith.constant dense<0.000000e+00> : vector<8x32xf32>
    %11 = tpu.matmul %9, %10, %cst_11 {dimension_numbers = #tpu.dot_dimension_numbers<[1], [0], [0], [1], [0, 0, 1, 1], [], []>} : vector<8x64xf32>, vector<64x32xf32>, vector<8x32xf32> -> vector<8x32xf32>
    %c0_12 = arith.constant 0 : index
    %c0_13 = arith.constant 0 : index
    %12 = vector.load %arg6[%c0_12, %c0_13] : memref<1x32xf32, #tpu.memory_space<vmem>>, vector<1x32xf32>
    %13 = vector.broadcast %12 : vector<1x32xf32> to vector<8x32xf32>
    %14 = arith.addf %11, %13 : vector<8x32xf32>
    %cst_14 = arith.constant 0.000000e+00 : f32
    %15 = vector.broadcast %cst_14 : f32 to vector<8x32xf32>
    %16 = arith.maximumf %14, %15 : vector<8x32xf32>
    %c0_15 = arith.constant 0 : index
    %c0_16 = arith.constant 0 : index
    %17 = vector.load %arg2[%c0_15, %c0_16] : memref<8x16xf32, #tpu.memory_space<vmem>>, vector<8x16xf32>
    %c0_17 = arith.constant 0 : index
    %c0_18 = arith.constant 0 : index
    %18 = vector.load %arg7[%c0_17, %c0_18] : memref<64x64xf32, #tpu.memory_space<vmem>>, vector<64x64xf32>
    %cst_19 = arith.constant dense<0.000000e+00> : vector<8x64xf32>
    %19 = tpu.matmul %9, %18, %cst_19 {dimension_numbers = #tpu.dot_dimension_numbers<[1], [0], [0], [1], [0, 0, 1, 1], [], []>} : vector<8x64xf32>, vector<64x64xf32>, vector<8x64xf32> -> vector<8x64xf32>
    %c0_20 = arith.constant 0 : index
    %c0_21 = arith.constant 0 : index
    %20 = vector.load %arg8[%c0_20, %c0_21] : memref<16x64xf32, #tpu.memory_space<vmem>>, vector<16x64xf32>
    %cst_22 = arith.constant dense<0.000000e+00> : vector<8x64xf32>
    %21 = tpu.matmul %17, %20, %cst_22 {dimension_numbers = #tpu.dot_dimension_numbers<[1], [0], [0], [1], [0, 0, 1, 1], [], []>} : vector<8x16xf32>, vector<16x64xf32>, vector<8x64xf32> -> vector<8x64xf32>
    %22 = arith.addf %19, %21 : vector<8x64xf32>
    %c0_23 = arith.constant 0 : index
    %c0_24 = arith.constant 0 : index
    %23 = vector.load %arg9[%c0_23, %c0_24] : memref<1x64xf32, #tpu.memory_space<vmem>>, vector<1x64xf32>
    %24 = vector.broadcast %23 : vector<1x64xf32> to vector<8x64xf32>
    %25 = arith.addf %22, %24 : vector<8x64xf32>
    %cst_25 = arith.constant 0.000000e+00 : f32
    %26 = vector.broadcast %cst_25 : f32 to vector<8x64xf32>
    %27 = arith.maximumf %25, %26 : vector<8x64xf32>
    %c0_26 = arith.constant 0 : index
    %c0_27 = arith.constant 0 : index
    %28 = vector.load %arg10[%c0_26, %c0_27] : memref<64x64xf32, #tpu.memory_space<vmem>>, vector<64x64xf32>
    %cst_28 = arith.constant dense<0.000000e+00> : vector<8x64xf32>
    %29 = tpu.matmul %9, %28, %cst_28 {dimension_numbers = #tpu.dot_dimension_numbers<[1], [0], [0], [1], [0, 0, 1, 1], [], []>} : vector<8x64xf32>, vector<64x64xf32>, vector<8x64xf32> -> vector<8x64xf32>
    %c0_29 = arith.constant 0 : index
    %c0_30 = arith.constant 0 : index
    %30 = vector.load %arg11[%c0_29, %c0_30] : memref<16x64xf32, #tpu.memory_space<vmem>>, vector<16x64xf32>
    %cst_31 = arith.constant dense<0.000000e+00> : vector<8x64xf32>
    %31 = tpu.matmul %17, %30, %cst_31 {dimension_numbers = #tpu.dot_dimension_numbers<[1], [0], [0], [1], [0, 0, 1, 1], [], []>} : vector<8x16xf32>, vector<16x64xf32>, vector<8x64xf32> -> vector<8x64xf32>
    %32 = arith.addf %29, %31 : vector<8x64xf32>
    %c0_32 = arith.constant 0 : index
    %c0_33 = arith.constant 0 : index
    %33 = vector.load %arg13[%c0_32, %c0_33] : memref<64x64xf32, #tpu.memory_space<vmem>>, vector<64x64xf32>
    %cst_34 = arith.constant dense<0.000000e+00> : vector<8x64xf32>
    %34 = tpu.matmul %27, %33, %cst_34 {dimension_numbers = #tpu.dot_dimension_numbers<[1], [0], [0], [1], [0, 0, 1, 1], [], []>} : vector<8x64xf32>, vector<64x64xf32>, vector<8x64xf32> -> vector<8x64xf32>
    %35 = arith.addf %32, %34 : vector<8x64xf32>
    %c0_35 = arith.constant 0 : index
    %c0_36 = arith.constant 0 : index
    %36 = vector.load %arg12[%c0_35, %c0_36] : memref<1x64xf32, #tpu.memory_space<vmem>>, vector<1x64xf32>
    %37 = vector.broadcast %36 : vector<1x64xf32> to vector<8x64xf32>
    %38 = arith.addf %35, %37 : vector<8x64xf32>
    %cst_37 = arith.constant 0.000000e+00 : f32
    %39 = vector.broadcast %cst_37 : f32 to vector<8x64xf32>
    %40 = arith.maximumf %38, %39 : vector<8x64xf32>
    %c0_38 = arith.constant 0 : index
    %c0_39 = arith.constant 0 : index
    %41 = vector.load %arg14[%c0_38, %c0_39] : memref<32x256xf32, #tpu.memory_space<vmem>>, vector<32x256xf32>
    %cst_40 = arith.constant dense<0.000000e+00> : vector<8x256xf32>
    %42 = tpu.matmul %16, %41, %cst_40 {dimension_numbers = #tpu.dot_dimension_numbers<[1], [0], [0], [1], [0, 0, 1, 1], [], []>} : vector<8x32xf32>, vector<32x256xf32>, vector<8x256xf32> -> vector<8x256xf32>
    %c0_41 = arith.constant 0 : index
    %c0_42 = arith.constant 0 : index
    %43 = vector.load %arg15[%c0_41, %c0_42] : memref<64x256xf32, #tpu.memory_space<vmem>>, vector<64x256xf32>
    %cst_43 = arith.constant dense<0.000000e+00> : vector<8x256xf32>
    %44 = tpu.matmul %27, %43, %cst_43 {dimension_numbers = #tpu.dot_dimension_numbers<[1], [0], [0], [1], [0, 0, 1, 1], [], []>} : vector<8x64xf32>, vector<64x256xf32>, vector<8x256xf32> -> vector<8x256xf32>
    %45 = arith.addf %42, %44 : vector<8x256xf32>
    %c0_44 = arith.constant 0 : index
    %c0_45 = arith.constant 0 : index
    %46 = vector.load %arg16[%c0_44, %c0_45] : memref<64x256xf32, #tpu.memory_space<vmem>>, vector<64x256xf32>
    %cst_46 = arith.constant dense<0.000000e+00> : vector<8x256xf32>
    %47 = tpu.matmul %40, %46, %cst_46 {dimension_numbers = #tpu.dot_dimension_numbers<[1], [0], [0], [1], [0, 0, 1, 1], [], []>} : vector<8x64xf32>, vector<64x256xf32>, vector<8x256xf32> -> vector<8x256xf32>
    %48 = arith.addf %45, %47 : vector<8x256xf32>
    %c0_47 = arith.constant 0 : index
    %c0_48 = arith.constant 0 : index
    %49 = vector.load %arg17[%c0_47, %c0_48] : memref<64x256xf32, #tpu.memory_space<vmem>>, vector<64x256xf32>
    %cst_49 = arith.constant dense<0.000000e+00> : vector<8x256xf32>
    %50 = tpu.matmul %9, %49, %cst_49 {dimension_numbers = #tpu.dot_dimension_numbers<[1], [0], [0], [1], [0, 0, 1, 1], [], []>} : vector<8x64xf32>, vector<64x256xf32>, vector<8x256xf32> -> vector<8x256xf32>
    %51 = arith.addf %48, %50 : vector<8x256xf32>
    %c0_50 = arith.constant 0 : index
    %c0_51 = arith.constant 0 : index
    %52 = vector.load %arg18[%c0_50, %c0_51] : memref<1x256xf32, #tpu.memory_space<vmem>>, vector<1x256xf32>
    %53 = vector.broadcast %52 : vector<1x256xf32> to vector<8x256xf32>
    %54 = arith.addf %51, %53 : vector<8x256xf32>
    %c0_52 = arith.constant 0 : index
    %c0_53 = arith.constant 0 : index
    %55 = vector.load %arg19[%c0_52, %c0_53] : memref<8x256xf32, #tpu.memory_space<vmem>>, vector<8x256xf32>
    tpu.vector_store %arg19[%c0_52, %c0_53], %54 {strides = array<i32>} : memref<8x256xf32, #tpu.memory_space<vmem>>, vector<8x256xf32>,
    return
  }
}

</mosaic_0001>

<llo_original>
// kernel: model_forward.1
$region0: #{model_forward.1}
  #allocation0 [shape = 'u32[]', space=smem, size = 0x4, offset = 0x4, fixed_abs, tag = 'smem constant byte address 0x4 - core index']
  #allocation1 [shape = 'u32[72,128]{1,0:T(1,128)}', space=vmem, size = 0x9000, scoped, tag = 'internal scratch']
  %s0 = inlined_call_operand.vmem [shape: f32[128,27], index: 0, kind: input, shape index: {}]
  %s1 = inlined_call_operand.vmem [shape: f32[8,128], index: 1, kind: input, shape index: {}]
  %s2 = inlined_call_operand.vmem [shape: f32[8,16], index: 2, kind: input, shape index: {}]
  %s3 = inlined_call_operand.vmem [shape: f32[27,64], index: 3, kind: input, shape index: {}]
  %s4 = inlined_call_operand.vmem [shape: f32[1,64], index: 4, kind: input, shape index: {}]
  %s5 = inlined_call_operand.vmem [shape: f32[64,32], index: 5, kind: input, shape index: {}]
  %s6 = inlined_call_operand.vmem [shape: f32[1,32], index: 6, kind: input, shape index: {}]
  %s7 = inlined_call_operand.vmem [shape: f32[64,64], index: 7, kind: input, shape index: {}]
  %s8 = inlined_call_operand.vmem [shape: f32[16,64], index: 8, kind: input, shape index: {}]
  %s9 = inlined_call_operand.vmem [shape: f32[1,64], index: 9, kind: input, shape index: {}]
  %s10 = inlined_call_operand.vmem [shape: f32[64,64], index: 10, kind: input, shape index: {}]
  %s11 = inlined_call_operand.vmem [shape: f32[16,64], index: 11, kind: input, shape index: {}]
  %s12 = inlined_call_operand.vmem [shape: f32[1,64], index: 12, kind: input, shape index: {}]
  %s13 = inlined_call_operand.vmem [shape: f32[64,64], index: 13, kind: input, shape index: {}]
  %s14 = inlined_call_operand.vmem [shape: f32[32,256], index: 14, kind: input, shape index: {}]
  %s15 = inlined_call_operand.vmem [shape: f32[64,256], index: 15, kind: input, shape index: {}]
  %s16 = inlined_call_operand.vmem [shape: f32[64,256], index: 16, kind: input, shape index: {}]
  %s17 = inlined_call_operand.vmem [shape: f32[64,256], index: 17, kind: input, shape index: {}]
  %s18 = inlined_call_operand.vmem [shape: f32[1,256], index: 18, kind: input, shape index: {}]
  %s19 = inlined_call_operand.vmem [shape: f32[8,256], index: 19, kind: output, shape index: {}]
  %s20 = sld [smem:[#allocation0]]
  $region86: #{model_forward.1} parent=0
    _
  %s22 = ssub.s32 1, %s20
  %s23 = scalar_select 0, %s22, %s20
  // Predicated region
  $region2: #{model_forward.1} parent=0 // pred_check
    _
  $region3: #{model_forward.1} parent=0 // pred_check_branch
    %25 = sbr.rel (0) target = $region5
  $region4: #{model_forward.1} parent=0 // pred_region
    _
  $region5: #{model_forward.1} parent=0 // pred_fallthru
    _
  // Predicated region
  $region6: #{model_forward.1} parent=0 // pred_check
    _
  $region7: #{model_forward.1} parent=0 // pred_check_branch
    %27 = sbr.rel (0) target = $region9
  $region8: #{model_forward.1} parent=0 // pred_region
    _
  $region9: #{model_forward.1} parent=0 // pred_fallthru
    _
  // Predicated region
  $region10: #{model_forward.1} parent=0 // pred_check
    _
  $region11: #{model_forward.1} parent=0 // pred_check_branch
    %29 = sbr.rel (0) target = $region13
  $region12: #{model_forward.1} parent=0 // pred_region
    _
  $region13: #{model_forward.1} parent=0 // pred_fallthru
    _
  // Predicated region
  $region14: #{model_forward.1} parent=0 // pred_check
    _
  $region15: #{model_forward.1} parent=0 // pred_check_branch
    %31 = sbr.rel (0) target = $region17
  $region16: #{model_forward.1} parent=0 // pred_region
    _
  $region17: #{model_forward.1} parent=0 // pred_fallthru
    _
  // Predicated region
  $region18: #{model_forward.1} parent=0 // pred_check
    _
  $region19: #{model_forward.1} parent=0 // pred_check_branch
    %33 = sbr.rel (0) target = $region21
  $region20: #{model_forward.1} parent=0 // pred_region
    _
  $region21: #{model_forward.1} parent=0 // pred_fallthru
    _
  // Predicated region
  $region22: #{model_forward.1} parent=0 // pred_check
    _
  $region23: #{model_forward.1} parent=0 // pred_check_branch
    %35 = sbr.rel (0) target = $region25
  $region24: #{model_forward.1} parent=0 // pred_region
    _
  $region25: #{model_forward.1} parent=0 // pred_fallthru
    _
  // Predicated region
  $region26: #{model_forward.1} parent=0 // pred_check
    _
  $region27: #{model_forward.1} parent=0 // pred_check_branch
    %37 = sbr.rel (0) target = $region29
  $region28: #{model_forward.1} parent=0 // pred_region
    _
  $region29: #{model_forward.1} parent=0 // pred_fallthru
    _
  // Predicated region
  $region30: #{model_forward.1} parent=0 // pred_check
    _
  $region31: #{model_forward.1} parent=0 // pred_check_branch
    %39 = sbr.rel (0) target = $region33
  $region32: #{model_forward.1} parent=0 // pred_region
    _
  $region33: #{model_forward.1} parent=0 // pred_fallthru
    _
  // Predicated region
  $region34: #{model_forward.1} parent=0 // pred_check
    _
  $region35: #{model_forward.1} parent=0 // pred_check_branch
    %41 = sbr.rel (0) target = $region37
  $region36: #{model_forward.1} parent=0 // pred_region
    _
  $region37: #{model_forward.1} parent=0 // pred_fallthru
    _
  // Predicated region
  $region38: #{model_forward.1} parent=0 // pred_check
    _
  $region39: #{model_forward.1} parent=0 // pred_check_branch
    %43 = sbr.rel (0) target = $region41
  $region40: #{model_forward.1} parent=0 // pred_region
    _
  $region41: #{model_forward.1} parent=0 // pred_fallthru
    _
  // Predicated region
  $region42: #{model_forward.1} parent=0 // pred_check
    _
  $region43: #{model_forward.1} parent=0 // pred_check_branch
    %45 = sbr.rel (0) target = $region45
  $region44: #{model_forward.1} parent=0 // pred_region
    _
  $region45: #{model_forward.1} parent=0 // pred_fallthru
    _
  // Predicated region
  $region46: #{model_forward.1} parent=0 // pred_check
    _
  $region47: #{model_forward.1} parent=0 // pred_check_branch
    %47 = sbr.rel (0) target = $region49
  $region48: #{model_forward.1} parent=0 // pred_region
    _
  $region49: #{model_forward.1} parent=0 // pred_fallthru
    _
  // Predicated region
  $region50: #{model_forward.1} parent=0 // pred_check
    _
  $region51: #{model_forward.1} parent=0 // pred_check_branch
    %49 = sbr.rel (0) target = $region53
  $region52: #{model_forward.1} parent=0 // pred_region
    _
  $region53: #{model_forward.1} parent=0 // pred_fallthru
    _
  // Predicated region
  $region54: #{model_forward.1} parent=0 // pred_check
    _
  $region55: #{model_forward.1} parent=0 // pred_check_branch
    %51 = sbr.rel (0) target = $region57
  $region56: #{model_forward.1} parent=0 // pred_region
    _
  $region57: #{model_forward.1} parent=0 // pred_fallthru
    _
  // Predicated region
  $region58: #{model_forward.1} parent=0 // pred_check
    _
  $region59: #{model_forward.1} parent=0 // pred_check_branch
    %53 = sbr.rel (0) target = $region61
  $region60: #{model_forward.1} parent=0 // pred_region
    _
  $region61: #{model_forward.1} parent=0 // pred_fallthru
    _
  // Predicated region
  $region62: #{model_forward.1} parent=0 // pred_check
    _
  $region63: #{model_forward.1} parent=0 // pred_check_branch
    %55 = sbr.rel (0) target = $region65
  $region64: #{model_forward.1} parent=0 // pred_region
    _
  $region65: #{model_forward.1} parent=0 // pred_fallthru
    _
  // Predicated region
  $region66: #{model_forward.1} parent=0 // pred_check
    _
  $region67: #{model_forward.1} parent=0 // pred_check_branch
    %57 = sbr.rel (0) target = $region69
  $region68: #{model_forward.1} parent=0 // pred_region
    _
  $region69: #{model_forward.1} parent=0 // pred_fallthru
    _
  // Predicated region
  $region70: #{model_forward.1} parent=0 // pred_check
    _
  $region71: #{model_forward.1} parent=0 // pred_check_branch
    %59 = sbr.rel (0) target = $region73
  $region72: #{model_forward.1} parent=0 // pred_region
    _
  $region73: #{model_forward.1} parent=0 // pred_fallthru
    _
  // Predicated region
  $region74: #{model_forward.1} parent=0 // pred_check
    _
  $region75: #{model_forward.1} parent=0 // pred_check_branch
    %61 = sbr.rel (0) target = $region77
  $region76: #{model_forward.1} parent=0 // pred_region
    _
  $region77: #{model_forward.1} parent=0 // pred_fallthru
    _
  %v62 = vld [vmem:[%s0] sm:$0xff]
  %v63 = vld [vmem:[%s0 + $0x8] sm:$0xff]
  %v64 = vld [vmem:[%s0 + $0x10] sm:$0xff]
  %v65 = vld [vmem:[%s0 + $0x18] sm:$0xff]
  %v66 = vld [vmem:[%s0 + $0x20] sm:$0xff]
  %v67 = vld [vmem:[%s0 + $0x28] sm:$0xff]
  %v68 = vld [vmem:[%s0 + $0x30] sm:$0xff]
  %v69 = vld [vmem:[%s0 + $0x38] sm:$0xff]
  %v70 = vld [vmem:[%s0 + $0x40] sm:$0xff]
  %v71 = vld [vmem:[%s0 + $0x48] sm:$0xff]
  %v72 = vld [vmem:[%s0 + $0x50] sm:$0xff]
  %v73 = vld [vmem:[%s0 + $0x58] sm:$0xff]
  %v74 = vld [vmem:[%s0 + $0x60] sm:$0xff]
  %v75 = vld [vmem:[%s0 + $0x68] sm:$0xff]
  %v76 = vld [vmem:[%s0 + $0x70] sm:$0xff]
  %v77 = vld [vmem:[%s0 + $0x78] sm:$0xff]
  %v78 = vld [vmem:[%s3] sm:$0xff]
  %v79 = vld [vmem:[%s3 + $0x8] sm:$0xff]
  %v80 = vld [vmem:[%s3 + $0x10] sm:$0xff]
  %v81 = vld [vmem:[%s3 + $0x18] sm:$0x7]
  %v82 = vld [vmem:[%s4] sm:$0x1]
  %v84 = vperm.slane %v82, 0
  %vm86 = vcmask 220160
  %v88 = vsel %vm86, %v62, 0
  %v91 = vsel %vm86, %v63, 0
  %v94 = vsel %vm86, %v64, 0
  %v97 = vsel %vm86, %v65, 0
  %v100 = vsel %vm86, %v66, 0
  %v103 = vsel %vm86, %v67, 0
  %v106 = vsel %vm86, %v68, 0
  %v109 = vsel %vm86, %v69, 0
  %v112 = vsel %vm86, %v70, 0
  %v115 = vsel %vm86, %v71, 0
  %v118 = vsel %vm86, %v72, 0
  %v121 = vsel %vm86, %v73, 0
  %v124 = vsel %vm86, %v74, 0
  %v127 = vsel %vm86, %v75, 0
  %v130 = vsel %vm86, %v76, 0
  %v133 = vsel %vm86, %v77, 0
  %vm135 = vcmask 1042432
  %v137 = vsel %vm135, %v81, 0
  %139 = vmatpush.msra.mxu0 0.0
  %140 = vmatpush.msra.mxu0 0.0
  %141 = vmatpush.msra.mxu0 0.0
  %142 = vmatpush.msra.mxu0 0.0
  %143 = vmatpush.msra.mxu0 0.0
  %144 = vmatpush.msra.mxu0 0.0
  %145 = vmatpush.msra.mxu0 0.0
  %146 = vmatpush.msra.mxu0 0.0
  %147 = vmatpush.msra.mxu0 0.0
  %148 = vmatpush.msra.mxu0 0.0
  %149 = vmatpush.msra.mxu0 0.0
  %150 = vmatpush.msra.mxu0 0.0
  %151 = vmatpush.msra.mxu0 %v137
  %152 = vmatpush.msra.mxu0 %v80
  %153 = vmatpush.msra.mxu0 %v79
  %154 = vmatpush.msra.mxu0 %v78
  %155 = vmatmul.f32.gmra.mxu0 %v88
  %v156 = vpop.f32.mrf.mxu0
  %v157 = vadd.f32 %v84, %v156
  %158 = vmatmul.f32.gmra.mxu0 %v91
  %v159 = vpop.f32.mrf.mxu0
  %v160 = vadd.f32 %v84, %v159
  %161 = vmatmul.f32.gmra.mxu0 %v94
  %v162 = vpop.f32.mrf.mxu0
  %v163 = vadd.f32 %v84, %v162
  %164 = vmatmul.f32.gmra.mxu0 %v97
  %v165 = vpop.f32.mrf.mxu0
  %v166 = vadd.f32 %v84, %v165
  %167 = vmatmul.f32.gmra.mxu0 %v100
  %v168 = vpop.f32.mrf.mxu0
  %v169 = vadd.f32 %v84, %v168
  %170 = vmatmul.f32.gmra.mxu0 %v103
  %v171 = vpop.f32.mrf.mxu0
  %v172 = vadd.f32 %v84, %v171
  %173 = vmatmul.f32.gmra.mxu0 %v106
  %v174 = vpop.f32.mrf.mxu0
  %v175 = vadd.f32 %v84, %v174
  %176 = vmatmul.f32.gmra.mxu0 %v109
  %v177 = vpop.f32.mrf.mxu0
  %v178 = vadd.f32 %v84, %v177
  %179 = vmatmul.f32.gmra.mxu0 %v112
  %v180 = vpop.f32.mrf.mxu0
  %v181 = vadd.f32 %v84, %v180
  %182 = vmatmul.f32.gmra.mxu0 %v115
  %v183 = vpop.f32.mrf.mxu0
  %v184 = vadd.f32 %v84, %v183
  %185 = vmatmul.f32.gmra.mxu0 %v118
  %v186 = vpop.f32.mrf.mxu0
  %v187 = vadd.f32 %v84, %v186
  %188 = vmatmul.f32.gmra.mxu0 %v121
  %v189 = vpop.f32.mrf.mxu0
  %v190 = vadd.f32 %v84, %v189
  %191 = vmatmul.f32.gmra.mxu0 %v124
  %v192 = vpop.f32.mrf.mxu0
  %v193 = vadd.f32 %v84, %v192
  %194 = vmatmul.f32.gmra.mxu0 %v127
  %v195 = vpop.f32.mrf.mxu0
  %v196 = vadd.f32 %v84, %v195
  %197 = vmatmul.f32.gmra.mxu0 %v130
  %v198 = vpop.f32.mrf.mxu0
  %v199 = vadd.f32 %v84, %v198
  %200 = vmatmul.f32.gmra.mxu0 %v133
  %v201 = vpop.f32.mrf.mxu0
  %v202 = vadd.f32 %v84, %v201
  %203 = vdwg.mxu0
  %v204 = vmax.f32 %v157, 0.0
  %v205 = vmax.f32 %v160, 0.0
  %v206 = vmax.f32 %v163, 0.0
  %v207 = vmax.f32 %v166, 0.0
  %v208 = vmax.f32 %v169, 0.0
  %v209 = vmax.f32 %v172, 0.0
  %v210 = vmax.f32 %v175, 0.0
  %v211 = vmax.f32 %v178, 0.0
  %v212 = vmax.f32 %v181, 0.0
  %v213 = vmax.f32 %v184, 0.0
  %v214 = vmax.f32 %v187, 0.0
  %v215 = vmax.f32 %v190, 0.0
  %v216 = vmax.f32 %v193, 0.0
  %v217 = vmax.f32 %v196, 0.0
  %v218 = vmax.f32 %v199, 0.0
  %v219 = vmax.f32 %v202, 0.0
  %v220 = vld [vmem:[%s1] sm:$0xff]
  %221 = vmatpush.msra.mxu0 %v219
  %222 = vmatpush.msra.mxu0 %v218
  %223 = vmatpush.msra.mxu0 %v217
  %224 = vmatpush.msra.mxu0 %v216
  %225 = vmatpush.msra.mxu0 %v215
  %226 = vmatpush.msra.mxu0 %v214
  %227 = vmatpush.msra.mxu0 %v213
  %228 = vmatpush.msra.mxu0 %v212
  %229 = vmatpush.msra.mxu0 %v211
  %230 = vmatpush.msra.mxu0 %v210
  %231 = vmatpush.msra.mxu0 %v209
  %232 = vmatpush.msra.mxu0 %v208
  %233 = vmatpush.msra.mxu0 %v207
  %234 = vmatpush.msra.mxu0 %v206
  %235 = vmatpush.msra.mxu0 %v205
  %236 = vmatpush.msra.mxu0 %v204
  %237 = vmatmul.f32.gmra.mxu0 %v220
  %v238 = vpop.f32.mrf.mxu0
  %v239 = vadd.f32 0.0, %v238
  %240 = vdwg.mxu0
  %v241 = vld [vmem:[%s5] sm:$0xff]
  %v242 = vld [vmem:[%s5 + $0x8] sm:$0xff]
  %v243 = vld [vmem:[%s5 + $0x10] sm:$0xff]
  %v244 = vld [vmem:[%s5 + $0x18] sm:$0xff]
  %v245 = vld [vmem:[%s5 + $0x20] sm:$0xff]
  %v246 = vld [vmem:[%s5 + $0x28] sm:$0xff]
  %v247 = vld [vmem:[%s5 + $0x30] sm:$0xff]
  %v248 = vld [vmem:[%s5 + $0x38] sm:$0xff]
  %v249 = vld [vmem:[%s6] sm:$0x1]
  %v251 = vperm.slane %v249, 0
  %vm253 = vcmask 523264
  %v255 = vsel %vm253, %v239, 0
  %257 = vmatpush.msra.mxu0 0.0
  %258 = vmatpush.msra.mxu0 0.0
  %259 = vmatpush.msra.mxu0 0.0
  %260 = vmatpush.msra.mxu0 0.0
  %261 = vmatpush.msra.mxu0 0.0
  %262 = vmatpush.msra.mxu0 0.0
  %263 = vmatpush.msra.mxu0 0.0
  %264 = vmatpush.msra.mxu0 0.0
  %265 = vmatpush.msra.mxu0 %v248
  %266 = vmatpush.msra.mxu0 %v247
  %267 = vmatpush.msra.mxu0 %v246
  %268 = vmatpush.msra.mxu0 %v245
  %269 = vmatpush.msra.mxu0 %v244
  %270 = vmatpush.msra.mxu0 %v243
  %271 = vmatpush.msra.mxu0 %v242
  %272 = vmatpush.msra.mxu0 %v241
  %273 = vmatmul.f32.gmra.mxu0 %v255
  %v274 = vpop.f32.mrf.mxu0
  %v275 = vadd.f32 %v251, %v274
  %276 = vdwg.mxu0
  %v277 = vmax.f32 %v275, 0.0
  %v278 = vld [vmem:[%s2] sm:$0xff]
  %v279 = vld [vmem:[%s7] sm:$0xff]
  %v280 = vld [vmem:[%s7 + $0x8] sm:$0xff]
  %v281 = vld [vmem:[%s7 + $0x10] sm:$0xff]
  %v282 = vld [vmem:[%s7 + $0x18] sm:$0xff]
  %v283 = vld [vmem:[%s7 + $0x20] sm:$0xff]
  %v284 = vld [vmem:[%s7 + $0x28] sm:$0xff]
  %v285 = vld [vmem:[%s7 + $0x30] sm:$0xff]
  %v286 = vld [vmem:[%s7 + $0x38] sm:$0xff]
  %v287 = vld [vmem:[%s8] sm:$0xff]
  %v288 = vld [vmem:[%s8 + $0x8] sm:$0xff]
  %vm289 = vcmask 130048
  %v291 = vsel %vm289, %v278, 0
  %293 = vmatpush.msra.mxu0 0.0
  %294 = vmatpush.msra.mxu0 0.0
  %295 = vmatpush.msra.mxu0 0.0
  %296 = vmatpush.msra.mxu0 0.0
  %297 = vmatpush.msra.mxu0 0.0
  %298 = vmatpush.msra.mxu0 0.0
  %299 = vmatpush.msra.mxu0 0.0
  %300 = vmatpush.msra.mxu0 0.0
  %301 = vmatpush.msra.mxu0 0.0
  %302 = vmatpush.msra.mxu0 0.0
  %303 = vmatpush.msra.mxu0 0.0
  %304 = vmatpush.msra.mxu0 0.0
  %305 = vmatpush.msra.mxu0 0.0
  %306 = vmatpush.msra.mxu0 0.0
  %307 = vmatpush.msra.mxu0 %v288
  %308 = vmatpush.msra.mxu0 %v287
  %309 = vmatmul.f32.gmra.mxu0 %v291
  %v310 = vpop.f32.mrf.mxu0
  %v311 = vadd.f32 0.0, %v310
  %312 = vdwg.mxu0
  %313 = vmatpush.msra.mxu0 0.0
  %314 = vmatpush.msra.mxu0 0.0
  %315 = vmatpush.msra.mxu0 0.0
  %316 = vmatpush.msra.mxu0 0.0
  %317 = vmatpush.msra.mxu0 0.0
  %318 = vmatpush.msra.mxu0 0.0
  %319 = vmatpush.msra.mxu0 0.0
  %320 = vmatpush.msra.mxu0 0.0
  %321 = vmatpush.msra.mxu0 %v286
  %322 = vmatpush.msra.mxu0 %v285
  %323 = vmatpush.msra.mxu0 %v284
  %324 = vmatpush.msra.mxu0 %v283
  %325 = vmatpush.msra.mxu0 %v282
  %326 = vmatpush.msra.mxu0 %v281
  %327 = vmatpush.msra.mxu0 %v280
  %328 = vmatpush.msra.mxu0 %v279
  %329 = vmatmul.f32.gmra.mxu0 %v255
  %v330 = vpop.f32.mrf.mxu0
  %v331 = vadd.f32 %v311, %v330
  %332 = vdwg.mxu0
  %v333 = vld [vmem:[%s9] sm:$0x1]
  %v335 = vperm.slane %v333, 0
  %v337 = vadd.f32 %v331, %v335
  %v338 = vmax.f32 %v337, 0.0
  %v339 = vld [vmem:[%s10] sm:$0xff]
  %v340 = vld [vmem:[%s10 + $0x8] sm:$0xff]
  %v341 = vld [vmem:[%s10 + $0x10] sm:$0xff]
  %v342 = vld [vmem:[%s10 + $0x18] sm:$0xff]
  %v343 = vld [vmem:[%s10 + $0x20] sm:$0xff]
  %v344 = vld [vmem:[%s10 + $0x28] sm:$0xff]
  %v345 = vld [vmem:[%s10 + $0x30] sm:$0xff]
  %v346 = vld [vmem:[%s10 + $0x38] sm:$0xff]
  %v347 = vld [vmem:[%s11] sm:$0xff]
  %v348 = vld [vmem:[%s11 + $0x8] sm:$0xff]
  %349 = vmatpush.msra.mxu0 0.0
  %350 = vmatpush.msra.mxu0 0.0
  %351 = vmatpush.msra.mxu0 0.0
  %352 = vmatpush.msra.mxu0 0.0
  %353 = vmatpush.msra.mxu0 0.0
  %354 = vmatpush.msra.mxu0 0.0
  %355 = vmatpush.msra.mxu0 0.0
  %356 = vmatpush.msra.mxu0 0.0
  %357 = vmatpush.msra.mxu0 0.0
  %358 = vmatpush.msra.mxu0 0.0
  %359 = vmatpush.msra.mxu0 0.0
  %360 = vmatpush.msra.mxu0 0.0
  %361 = vmatpush.msra.mxu0 0.0
  %362 = vmatpush.msra.mxu0 0.0
  %363 = vmatpush.msra.mxu0 %v348
  %364 = vmatpush.msra.mxu0 %v347
  %365 = vmatmul.f32.gmra.mxu0 %v291
  %v366 = vpop.f32.mrf.mxu0
  %v367 = vadd.f32 0.0, %v366
  %368 = vdwg.mxu0
  %369 = vmatpush.msra.mxu0 0.0
  %370 = vmatpush.msra.mxu0 0.0
  %371 = vmatpush.msra.mxu0 0.0
  %372 = vmatpush.msra.mxu0 0.0
  %373 = vmatpush.msra.mxu0 0.0
  %374 = vmatpush.msra.mxu0 0.0
  %375 = vmatpush.msra.mxu0 0.0
  %376 = vmatpush.msra.mxu0 0.0
  %377 = vmatpush.msra.mxu0 %v346
  %378 = vmatpush.msra.mxu0 %v345
  %379 = vmatpush.msra.mxu0 %v344
  %380 = vmatpush.msra.mxu0 %v343
  %381 = vmatpush.msra.mxu0 %v342
  %382 = vmatpush.msra.mxu0 %v341
  %383 = vmatpush.msra.mxu0 %v340
  %384 = vmatpush.msra.mxu0 %v339
  %385 = vmatmul.f32.gmra.mxu0 %v255
  %v386 = vpop.f32.mrf.mxu0
  %v387 = vadd.f32 %v367, %v386
  %388 = vdwg.mxu0
  %v389 = vld [vmem:[%s13] sm:$0xff]
  %v390 = vld [vmem:[%s13 + $0x8] sm:$0xff]
  %v391 = vld [vmem:[%s13 + $0x10] sm:$0xff]
  %v392 = vld [vmem:[%s13 + $0x18] sm:$0xff]
  %v393 = vld [vmem:[%s13 + $0x20] sm:$0xff]
  %v394 = vld [vmem:[%s13 + $0x28] sm:$0xff]
  %v395 = vld [vmem:[%s13 + $0x30] sm:$0xff]
  %v396 = vld [vmem:[%s13 + $0x38] sm:$0xff]
  %v398 = vsel %vm253, %v338, 0
  %400 = vmatpush.msra.mxu0 0.0
  %401 = vmatpush.msra.mxu0 0.0
  %402 = vmatpush.msra.mxu0 0.0
  %403 = vmatpush.msra.mxu0 0.0
  %404 = vmatpush.msra.mxu0 0.0
  %405 = vmatpush.msra.mxu0 0.0
  %406 = vmatpush.msra.mxu0 0.0
  %407 = vmatpush.msra.mxu0 0.0
  %408 = vmatpush.msra.mxu0 %v396
  %409 = vmatpush.msra.mxu0 %v395
  %410 = vmatpush.msra.mxu0 %v394
  %411 = vmatpush.msra.mxu0 %v393
  %412 = vmatpush.msra.mxu0 %v392
  %413 = vmatpush.msra.mxu0 %v391
  %414 = vmatpush.msra.mxu0 %v390
  %415 = vmatpush.msra.mxu0 %v389
  %416 = vmatmul.f32.gmra.mxu0 %v398
  %v417 = vpop.f32.mrf.mxu0
  %v418 = vadd.f32 0.0, %v417
  %419 = vdwg.mxu0
  %v420 = vadd.f32 %v387, %v418
  %v421 = vld [vmem:[%s12] sm:$0x1]
  %v423 = vperm.slane %v421, 0
  %v425 = vadd.f32 %v420, %v423
  %v426 = vmax.f32 %v425, 0.0
  %v427 = vld [vmem:[%s14] sm:$0xff]
  %v428 = vld [vmem:[%s14 + $0x8] sm:$0xff]
  %v429 = vld [vmem:[%s14 + $0x10] sm:$0xff]
  %v430 = vld [vmem:[%s14 + $0x18] sm:$0xff]
  %v431 = vld [vmem:[%s14 + $0x20] sm:$0xff]
  %v432 = vld [vmem:[%s14 + $0x28] sm:$0xff]
  %v433 = vld [vmem:[%s14 + $0x30] sm:$0xff]
  %v434 = vld [vmem:[%s14 + $0x38] sm:$0xff]
  %v435 = vld [vmem:[%s15] sm:$0xff]
  %v436 = vld [vmem:[%s15 + $0x8] sm:$0xff]
  %v437 = vld [vmem:[%s15 + $0x10] sm:$0xff]
  %v438 = vld [vmem:[%s15 + $0x18] sm:$0xff]
  %v439 = vld [vmem:[%s15 + $0x20] sm:$0xff]
  %v440 = vld [vmem:[%s15 + $0x28] sm:$0xff]
  %v441 = vld [vmem:[%s15 + $0x30] sm:$0xff]
  %v442 = vld [vmem:[%s15 + $0x38] sm:$0xff]
  %v443 = vld [vmem:[%s15 + $0x40] sm:$0xff]
  %v444 = vld [vmem:[%s15 + $0x48] sm:$0xff]
  %v445 = vld [vmem:[%s15 + $0x50] sm:$0xff]
  %v446 = vld [vmem:[%s15 + $0x58] sm:$0xff]
  %v447 = vld [vmem:[%s15 + $0x60] sm:$0xff]
  %v448 = vld [vmem:[%s15 + $0x68] sm:$0xff]
  %v449 = vld [vmem:[%s15 + $0x70] sm:$0xff]
  %v450 = vld [vmem:[%s15 + $0x78] sm:$0xff]
  %451 = vmatpush.msra.mxu0 0.0
  %452 = vmatpush.msra.mxu0 0.0
  %453 = vmatpush.msra.mxu0 0.0
  %454 = vmatpush.msra.mxu0 0.0
  %455 = vmatpush.msra.mxu0 0.0
  %456 = vmatpush.msra.mxu0 0.0
  %457 = vmatpush.msra.mxu0 0.0
  %458 = vmatpush.msra.mxu0 0.0
  %459 = vmatpush.msra.mxu0 %v449
  %460 = vmatpush.msra.mxu0 %v447
  %461 = vmatpush.msra.mxu0 %v445
  %462 = vmatpush.msra.mxu0 %v443
  %463 = vmatpush.msra.mxu0 %v441
  %464 = vmatpush.msra.mxu0 %v439
  %465 = vmatpush.msra.mxu0 %v437
  %466 = vmatpush.msra.mxu0 %v435
  %467 = vmatmul.f32.gmra.mxu0 %v398
  %v468 = vpop.f32.mrf.mxu0
  %v469 = vadd.f32 0.0, %v468
  %470 = vdwg.mxu0
  %471 = vmatpush.msra.mxu0 0.0
  %472 = vmatpush.msra.mxu0 0.0
  %473 = vmatpush.msra.mxu0 0.0
  %474 = vmatpush.msra.mxu0 0.0
  %475 = vmatpush.msra.mxu0 0.0
  %476 = vmatpush.msra.mxu0 0.0
  %477 = vmatpush.msra.mxu0 0.0
  %478 = vmatpush.msra.mxu0 0.0
  %479 = vmatpush.msra.mxu0 %v450
  %480 = vmatpush.msra.mxu0 %v448
  %481 = vmatpush.msra.mxu0 %v446
  %482 = vmatpush.msra.mxu0 %v444
  %483 = vmatpush.msra.mxu0 %v442
  %484 = vmatpush.msra.mxu0 %v440
  %485 = vmatpush.msra.mxu0 %v438
  %486 = vmatpush.msra.mxu0 %v436
  %487 = vmatmul.f32.gmra.mxu0 %v398
  %v488 = vpop.f32.mrf.mxu0
  %v489 = vadd.f32 0.0, %v488
  %490 = vdwg.mxu0
  %vm491 = vcmask 261120
  %v493 = vsel %vm491, %v277, 0
  %495 = vmatpush.msra.mxu0 0.0
  %496 = vmatpush.msra.mxu0 0.0
  %497 = vmatpush.msra.mxu0 0.0
  %498 = vmatpush.msra.mxu0 0.0
  %499 = vmatpush.msra.mxu0 0.0
  %500 = vmatpush.msra.mxu0 0.0
  %501 = vmatpush.msra.mxu0 0.0
  %502 = vmatpush.msra.mxu0 0.0
  %503 = vmatpush.msra.mxu0 0.0
  %504 = vmatpush.msra.mxu0 0.0
  %505 = vmatpush.msra.mxu0 0.0
  %506 = vmatpush.msra.mxu0 0.0
  %507 = vmatpush.msra.mxu0 %v433
  %508 = vmatpush.msra.mxu0 %v431
  %509 = vmatpush.msra.mxu0 %v429
  %510 = vmatpush.msra.mxu0 %v427
  %511 = vmatmul.f32.gmra.mxu0 %v493
  %v512 = vpop.f32.mrf.mxu0
  %v513 = vadd.f32 %v469, %v512
  %514 = vdwg.mxu0
  %515 = vmatpush.msra.mxu0 0.0
  %516 = vmatpush.msra.mxu0 0.0
  %517 = vmatpush.msra.mxu0 0.0
  %518 = vmatpush.msra.mxu0 0.0
  %519 = vmatpush.msra.mxu0 0.0
  %520 = vmatpush.msra.mxu0 0.0
  %521 = vmatpush.msra.mxu0 0.0
  %522 = vmatpush.msra.mxu0 0.0
  %523 = vmatpush.msra.mxu0 0.0
  %524 = vmatpush.msra.mxu0 0.0
  %525 = vmatpush.msra.mxu0 0.0
  %526 = vmatpush.msra.mxu0 0.0
  %527 = vmatpush.msra.mxu0 %v434
  %528 = vmatpush.msra.mxu0 %v432
  %529 = vmatpush.msra.mxu0 %v430
  %530 = vmatpush.msra.mxu0 %v428
  %531 = vmatmul.f32.gmra.mxu0 %v493
  %v532 = vpop.f32.mrf.mxu0
  %v533 = vadd.f32 %v489, %v532
  %534 = vdwg.mxu0
  %v535 = vld [vmem:[%s16] sm:$0xff]
  %v536 = vld [vmem:[%s16 + $0x8] sm:$0xff]
  %v537 = vld [vmem:[%s16 + $0x10] sm:$0xff]
  %v538 = vld [vmem:[%s16 + $0x18] sm:$0xff]
  %v539 = vld [vmem:[%s16 + $0x20] sm:$0xff]
  %v540 = vld [vmem:[%s16 + $0x28] sm:$0xff]
  %v541 = vld [vmem:[%s16 + $0x30] sm:$0xff]
  %v542 = vld [vmem:[%s16 + $0x38] sm:$0xff]
  %v543 = vld [vmem:[%s16 + $0x40] sm:$0xff]
  %v544 = vld [vmem:[%s16 + $0x48] sm:$0xff]
  %v545 = vld [vmem:[%s16 + $0x50] sm:$0xff]
  %v546 = vld [vmem:[%s16 + $0x58] sm:$0xff]
  %v547 = vld [vmem:[%s16 + $0x60] sm:$0xff]
  %v548 = vld [vmem:[%s16 + $0x68] sm:$0xff]
  %v549 = vld [vmem:[%s16 + $0x70] sm:$0xff]
  %v550 = vld [vmem:[%s16 + $0x78] sm:$0xff]
  %v552 = vsel %vm253, %v426, 0
  %554 = vmatpush.msra.mxu0 0.0
  %555 = vmatpush.msra.mxu0 0.0
  %556 = vmatpush.msra.mxu0 0.0
  %557 = vmatpush.msra.mxu0 0.0
  %558 = vmatpush.msra.mxu0 0.0
  %559 = vmatpush.msra.mxu0 0.0
  %560 = vmatpush.msra.mxu0 0.0
  %561 = vmatpush.msra.mxu0 0.0
  %562 = vmatpush.msra.mxu0 %v549
  %563 = vmatpush.msra.mxu0 %v547
  %564 = vmatpush.msra.mxu0 %v545
  %565 = vmatpush.msra.mxu0 %v543
  %566 = vmatpush.msra.mxu0 %v541
  %567 = vmatpush.msra.mxu0 %v539
  %568 = vmatpush.msra.mxu0 %v537
  %569 = vmatpush.msra.mxu0 %v535
  %570 = vmatmul.f32.gmra.mxu0 %v552
  %v571 = vpop.f32.mrf.mxu0
  %v572 = vadd.f32 0.0, %v571
  %573 = vdwg.mxu0
  %574 = vmatpush.msra.mxu0 0.0
  %575 = vmatpush.msra.mxu0 0.0
  %576 = vmatpush.msra.mxu0 0.0
  %577 = vmatpush.msra.mxu0 0.0
  %578 = vmatpush.msra.mxu0 0.0
  %579 = vmatpush.msra.mxu0 0.0
  %580 = vmatpush.msra.mxu0 0.0
  %581 = vmatpush.msra.mxu0 0.0
  %582 = vmatpush.msra.mxu0 %v550
  %583 = vmatpush.msra.mxu0 %v548
  %584 = vmatpush.msra.mxu0 %v546
  %585 = vmatpush.msra.mxu0 %v544
  %586 = vmatpush.msra.mxu0 %v542
  %587 = vmatpush.msra.mxu0 %v540
  %588 = vmatpush.msra.mxu0 %v538
  %589 = vmatpush.msra.mxu0 %v536
  %590 = vmatmul.f32.gmra.mxu0 %v552
  %v591 = vpop.f32.mrf.mxu0
  %v592 = vadd.f32 0.0, %v591
  %593 = vdwg.mxu0
  %v594 = vadd.f32 %v513, %v572
  %v595 = vadd.f32 %v533, %v592
  %v596 = vld [vmem:[%s17] sm:$0xff]
  %v597 = vld [vmem:[%s17 + $0x8] sm:$0xff]
  %v598 = vld [vmem:[%s17 + $0x10] sm:$0xff]
  %v599 = vld [vmem:[%s17 + $0x18] sm:$0xff]
  %v600 = vld [vmem:[%s17 + $0x20] sm:$0xff]
  %v601 = vld [vmem:[%s17 + $0x28] sm:$0xff]
  %v602 = vld [vmem:[%s17 + $0x30] sm:$0xff]
  %v603 = vld [vmem:[%s17 + $0x38] sm:$0xff]
  %v604 = vld [vmem:[%s17 + $0x40] sm:$0xff]
  %v605 = vld [vmem:[%s17 + $0x48] sm:$0xff]
  %v606 = vld [vmem:[%s17 + $0x50] sm:$0xff]
  %v607 = vld [vmem:[%s17 + $0x58] sm:$0xff]
  %v608 = vld [vmem:[%s17 + $0x60] sm:$0xff]
  %v609 = vld [vmem:[%s17 + $0x68] sm:$0xff]
  %v610 = vld [vmem:[%s17 + $0x70] sm:$0xff]
  %v611 = vld [vmem:[%s17 + $0x78] sm:$0xff]
  %612 = vmatpush.msra.mxu0 0.0
  %613 = vmatpush.msra.mxu0 0.0
  %614 = vmatpush.msra.mxu0 0.0
  %615 = vmatpush.msra.mxu0 0.0
  %616 = vmatpush.msra.mxu0 0.0
  %617 = vmatpush.msra.mxu0 0.0
  %618 = vmatpush.msra.mxu0 0.0
  %619 = vmatpush.msra.mxu0 0.0
  %620 = vmatpush.msra.mxu0 %v610
  %621 = vmatpush.msra.mxu0 %v608
  %622 = vmatpush.msra.mxu0 %v606
  %623 = vmatpush.msra.mxu0 %v604
  %624 = vmatpush.msra.mxu0 %v602
  %625 = vmatpush.msra.mxu0 %v600
  %626 = vmatpush.msra.mxu0 %v598
  %627 = vmatpush.msra.mxu0 %v596
  %628 = vmatmul.f32.gmra.mxu0 %v255
  %v629 = vpop.f32.mrf.mxu0
  %v630 = vadd.f32 0.0, %v629
  %631 = vdwg.mxu0
  %632 = vmatpush.msra.mxu0 0.0
  %633 = vmatpush.msra.mxu0 0.0
  %634 = vmatpush.msra.mxu0 0.0
  %635 = vmatpush.msra.mxu0 0.0
  %636 = vmatpush.msra.mxu0 0.0
  %637 = vmatpush.msra.mxu0 0.0
  %638 = vmatpush.msra.mxu0 0.0
  %639 = vmatpush.msra.mxu0 0.0
  %640 = vmatpush.msra.mxu0 %v611
  %641 = vmatpush.msra.mxu0 %v609
  %642 = vmatpush.msra.mxu0 %v607
  %643 = vmatpush.msra.mxu0 %v605
  %644 = vmatpush.msra.mxu0 %v603
  %645 = vmatpush.msra.mxu0 %v601
  %646 = vmatpush.msra.mxu0 %v599
  %647 = vmatpush.msra.mxu0 %v597
  %648 = vmatmul.f32.gmra.mxu0 %v255
  %v649 = vpop.f32.mrf.mxu0
  %v650 = vadd.f32 0.0, %v649
  %651 = vdwg.mxu0
  %v652 = vadd.f32 %v594, %v630
  %v653 = vadd.f32 %v595, %v650
  %v654 = vld [vmem:[%s18] sm:$0x3]
  %v656 = vperm.slane %v654, 0
  %v657 = vperm.slane %v654, 1
  %v660 = vadd.f32 %v652, %v656
  %v661 = vadd.f32 %v653, %v657
  %662 = vst [vmem:[%s19] sm:$0xff] %v660
  %663 = vst [vmem:[%s19 + $0x8] sm:$0xff] %v661
  // Predicated region
  $region78: #{model_forward.1} parent=0 // pred_check
    _
  $region79: #{model_forward.1} parent=0 // pred_check_branch
    %665 = sbr.rel (0) target = $region81
  $region80: #{model_forward.1} parent=0 // pred_region
    _
  $region81: #{model_forward.1} parent=0 // pred_fallthru
    _
  // Predicated region
  $region82: #{model_forward.1} parent=0 // pred_check
    _
  $region83: #{model_forward.1} parent=0 // pred_check_branch
    %667 = sbr.rel (0) target = $region85
  $region84: #{model_forward.1} parent=0 // pred_region
    _
  $region85: #{model_forward.1} parent=0 // pred_fallthru
    _

</llo_original>
